<compile_context>
chip_gen: v7x
topology: tpu7x:2x2x1
jax: 0.10.0
libtpu: 0.0.40
codegen_flags: <defaults>
</compile_context>

<pallas_src>
import jax
import jax.numpy as jnp
from jax.experimental import pallas as pl
from jax.experimental.pallas import tpu as pltpu

LANES = 128
SUBLANES = 8
_MIN_PAD = SUBLANES * LANES            # 1024 elements = one f32 vreg
_TARGET_BLOCK_BYTES = 2 * 1024 * 1024  # ~2 MiB blocks: ~85%+ of HBM roofline


def _swish_kernel(x_ref, o_ref):
    x = x_ref[...].astype(jnp.float32)
    # sigmoid(x) = 0.5 * tanh(0.5 * x) + 0.5  -> one EUP push per element.
    sig = 0.5 * jnp.tanh(0.5 * x) + 0.5
    o_ref[...] = (x * sig).astype(o_ref.dtype)


def swish(x, *, target_block_bytes=_TARGET_BLOCK_BYTES):
    """Elementwise swish via Pallas. Accepts any shape / float dtype."""
    orig_shape = x.shape
    orig_dtype = x.dtype
    n = x.size
    if n == 0:
        return x

    dtype_bytes = jnp.dtype(orig_dtype).itemsize

    flat = x.reshape(-1)
    n_pad = (-n) % _MIN_PAD
    if n_pad:
        # Rare ragged path: pad only to one-vreg granularity.
        flat = jnp.concatenate([flat, jnp.zeros((n_pad,), dtype=orig_dtype)])
    rows = flat.size // LANES          # always a multiple of 8
    slab = flat.reshape(rows, LANES)

    # ~2 MiB per block, multiple of 8 sublanes, capped at the full array.
    tile_rows = max(SUBLANES, target_block_bytes // (LANES * dtype_bytes))
    tile_rows = (tile_rows // SUBLANES) * SUBLANES
    tile_rows = min(tile_rows, rows)

    grid = (pl.cdiv(rows, tile_rows),)  # partial last block is masked by Pallas

    out = pl.pallas_call(
        _swish_kernel,
        out_shape=jax.ShapeDtypeStruct((rows, LANES), orig_dtype),
        grid_spec=pltpu.PrefetchScalarGridSpec(
            num_scalar_prefetch=0,
            grid=grid,
            in_specs=[pl.BlockSpec((tile_rows, LANES), lambda i: (i, 0))],
            out_specs=pl.BlockSpec((tile_rows, LANES), lambda i: (i, 0)),
        ),
        compiler_params=pltpu.CompilerParams(
            dimension_semantics=("parallel",),
        ),
        cost_estimate=pl.CostEstimate(
            flops=5 * n,
            transcendentals=n,
            bytes_accessed=2 * n * dtype_bytes,
        ),
    )(slab)

    if n_pad:
        return out.reshape(-1)[:n].reshape(orig_shape)
    return out.reshape(orig_shape)


if __name__ == "__main__":
    key = jax.random.PRNGKey(0)

    # Small NCDHW input consistent with a 3D-CNN VAE activation (fast path,
    # size is a multiple of 1024).
    x = jax.random.normal(key, (2, 4, 8, 16, 16), dtype=jnp.float32)
    y = jax.block_until_ready(swish(x))
    y_ref = x * jax.nn.sigmoid(x)
    assert y.shape == x.shape and y.dtype == x.dtype
    assert jnp.max(jnp.abs(y - y_ref)) < 1e-5

    # Ragged shape exercising the padded / masked-last-block path.
    x2 = jax.random.normal(jax.random.PRNGKey(1), (3, 5, 7), dtype=jnp.float32)
    y2 = jax.block_until_ready(swish(x2))
    y2_ref = x2 * jax.nn.sigmoid(x2)
    assert y2.shape == x2.shape and y2.dtype == x2.dtype
    assert jnp.max(jnp.abs(y2 - y2_ref)) < 1e-5

    print("KERNEL_OK")
</pallas_src>

<mosaic_0001>
module attributes {stable_mosaic.version = 11 : i64} {
  func.func @_swish_kernel(%arg0: i32, %arg1: memref<128x128xf32, #tpu.memory_space<vmem>>, %arg2: memref<128x128xf32, #tpu.memory_space<vmem>>) attributes {dimension_semantics = [#tpu.dimension_semantics<parallel>], iteration_bounds = array<i64: 1>, scalar_prefetch = 0 : i64, scratch_operands = 0 : i64, tpu.core_type = #tpu.core_type<tc>, window_params = [{transform_indices = @transform_0, window_bounds = array<i64: 128, 128>}, {transform_indices = @transform_1, window_bounds = array<i64: 128, 128>}]} {
    %c0 = arith.constant 0 : index
    %c0_0 = arith.constant 0 : index
    %0 = vector.load %arg1[%c0, %c0_0] : memref<128x128xf32, #tpu.memory_space<vmem>>, vector<128x128xf32>
    %cst = arith.constant 5.000000e-01 : f32
    %1 = vector.broadcast %cst : f32 to vector<128x128xf32>
    %2 = arith.mulf %1, %0 : vector<128x128xf32>
    %3 = math.tanh %2 : vector<128x128xf32>
    %cst_1 = arith.constant 5.000000e-01 : f32
    %4 = vector.broadcast %cst_1 : f32 to vector<128x128xf32>
    %5 = arith.mulf %4, %3 : vector<128x128xf32>
    %cst_2 = arith.constant 5.000000e-01 : f32
    %6 = vector.broadcast %cst_2 : f32 to vector<128x128xf32>
    %7 = arith.addf %5, %6 : vector<128x128xf32>
    %8 = arith.mulf %0, %7 : vector<128x128xf32>
    %c0_3 = arith.constant 0 : index
    %c0_4 = arith.constant 0 : index
    %9 = vector.load %arg2[%c0_3, %c0_4] : memref<128x128xf32, #tpu.memory_space<vmem>>, vector<128x128xf32>
    tpu.vector_store %arg2[%c0_3, %c0_4], %8 {strides = array<i32>} : memref<128x128xf32, #tpu.memory_space<vmem>>, vector<128x128xf32>,
    return
  }
  func.func @transform_0(%arg0: i32) -> (i32, i32) {
    %c0_i32 = arith.constant 0 : i32
    %c0_i32_0 = arith.constant 0 : i32
    return %arg0, %c0_i32 : i32, i32
  }
  func.func @transform_1(%arg0: i32) -> (i32, i32) {
    %c0_i32 = arith.constant 0 : i32
    %c0_i32_0 = arith.constant 0 : i32
    return %arg0, %c0_i32 : i32, i32
  }
}

</mosaic_0001>

<llo_original>
// kernel: tpu_custom_call.1
$region0: #{tpu_custom_call.1}
  #allocation0 [shape = 'u32[]', space=smem, size = 0x4, offset = 0x4, fixed_abs, tag = 'smem constant byte address 0x4 - core index']
  #allocation1 [shape = 'u32[144,128]{1,0:T(1,128)}', space=vmem, size = 0x12000, scoped, tag = 'internal scratch']
  %s0 = inlined_call_operand.hbm [shape: f32[128,128], index: 0, kind: input, shape index: {}]
  %s1 = inlined_call_operand.hbm [shape: f32[128,128], index: 1, kind: output, shape index: {}]
  %s2 = sld [smem:[#allocation0]]
  $region18: #{tpu_custom_call.1} parent=0
    _
  %s4 = ssub.s32 1, %s2
  %s5 = scalar_select 0, %s4, %s2
  $region1: #{tpu_custom_call.1} parent=0
    #allocation2 [shape = 'u8[65536]{0}', space=vmem, size = 0x10000, scoped, tag = 'input window, operand 0, single buffered']
    #allocation3 [shape = 's32[1]{0}', space=sflag, size = 0x4, scoped, tag = 'scoped memory for tpu_custom_call.1']
    #allocation4 [shape = 's32[1]{0}', space=sflag, size = 0x4, scoped, tag = 'scoped memory for tpu_custom_call.1']
    #allocation5 [shape = 'u8[65536]{0}', space=vmem, size = 0x10000, scoped, tag = 'output window, operand 0, single buffered']
    %6 = vsyncpa [#allocation3], 0
    %7 = vsyncpa [#allocation4], 0
    // Predicated region
    $region2: #{tpu_custom_call.1} parent=1 // pred_check
      _
    $region3: #{tpu_custom_call.1} parent=1 // pred_check_branch
      %9 = sbr.rel (0) target = $region5
    $region4: #{tpu_custom_call.1} parent=1 // pred_region
      %s11 = ssub.s32 2048, 2048
      %12 = vsyncadd [#allocation3], %s11
      %s13 = sshll.u32 [#allocation2], 4
      %s14 = int_to_ptr.vmem [resolvable:$true] %s13
      %19 = dma.hbm_to_vmem [thread:$0]  %s0, 2048, %s14, [#allocation3], 128, 128, 8
    $region5: #{tpu_custom_call.1} parent=1 // pred_fallthru
      _
    // Predicated region
    $region6: #{tpu_custom_call.1} parent=1 // pred_check
      _
    $region7: #{tpu_custom_call.1} parent=1 // pred_check_branch
      %21 = sbr.rel (0) target = $region9
    $region8: #{tpu_custom_call.1} parent=1 // pred_region
      %22 = dma.done [#allocation3], 2048
    $region9: #{tpu_custom_call.1} parent=1 // pred_fallthru
      _
    %v23 = vld [vmem:[#allocation2] sm:$0xff]
    %v24 = vld [vmem:[#allocation2 + $0x8] sm:$0xff]
    %v25 = vld [vmem:[#allocation2 + $0x10] sm:$0xff]
    %v26 = vld [vmem:[#allocation2 + $0x18] sm:$0xff]
    %v27 = vld [vmem:[#allocation2 + $0x20] sm:$0xff]
    %v28 = vld [vmem:[#allocation2 + $0x28] sm:$0xff]
    %v29 = vld [vmem:[#allocation2 + $0x30] sm:$0xff]
    %v30 = vld [vmem:[#allocation2 + $0x38] sm:$0xff]
    %v31 = vld [vmem:[#allocation2 + $0x40] sm:$0xff]
    %v32 = vld [vmem:[#allocation2 + $0x48] sm:$0xff]
    %v33 = vld [vmem:[#allocation2 + $0x50] sm:$0xff]
    %v34 = vld [vmem:[#allocation2 + $0x58] sm:$0xff]
    %v35 = vld [vmem:[#allocation2 + $0x60] sm:$0xff]
    %v36 = vld [vmem:[#allocation2 + $0x68] sm:$0xff]
    %v37 = vld [vmem:[#allocation2 + $0x70] sm:$0xff]
    %v38 = vld [vmem:[#allocation2 + $0x78] sm:$0xff]
    %v39 = vmul.f32 %v23, 0.5
    %v40 = vmul.f32 %v24, 0.5
    %v41 = vmul.f32 %v25, 0.5
    %v42 = vmul.f32 %v26, 0.5
    %v43 = vmul.f32 %v27, 0.5
    %v44 = vmul.f32 %v28, 0.5
    %v45 = vmul.f32 %v29, 0.5
    %v46 = vmul.f32 %v30, 0.5
    %v47 = vmul.f32 %v31, 0.5
    %v48 = vmul.f32 %v32, 0.5
    %v49 = vmul.f32 %v33, 0.5
    %v50 = vmul.f32 %v34, 0.5
    %v51 = vmul.f32 %v35, 0.5
    %v52 = vmul.f32 %v36, 0.5
    %v53 = vmul.f32 %v37, 0.5
    %v54 = vmul.f32 %v38, 0.5
    %v55 = vtanh.pop %v39
    %v56 = vtanh.pop %v40
    %v57 = vtanh.pop %v41
    %v58 = vtanh.pop %v42
    %v59 = vtanh.pop %v43
    %v60 = vtanh.pop %v44
    %v61 = vtanh.pop %v45
    %v62 = vtanh.pop %v46
    %v63 = vtanh.pop %v47
    %v64 = vtanh.pop %v48
    %v65 = vtanh.pop %v49
    %v66 = vtanh.pop %v50
    %v67 = vtanh.pop %v51
    %v68 = vtanh.pop %v52
    %v69 = vtanh.pop %v53
    %v70 = vtanh.pop %v54
    %v71 = vmul.f32 %v55, 0.5
    %v72 = vmul.f32 %v56, 0.5
    %v73 = vmul.f32 %v57, 0.5
    %v74 = vmul.f32 %v58, 0.5
    %v75 = vmul.f32 %v59, 0.5
    %v76 = vmul.f32 %v60, 0.5
    %v77 = vmul.f32 %v61, 0.5
    %v78 = vmul.f32 %v62, 0.5
    %v79 = vmul.f32 %v63, 0.5
    %v80 = vmul.f32 %v64, 0.5
    %v81 = vmul.f32 %v65, 0.5
    %v82 = vmul.f32 %v66, 0.5
    %v83 = vmul.f32 %v67, 0.5
    %v84 = vmul.f32 %v68, 0.5
    %v85 = vmul.f32 %v69, 0.5
    %v86 = vmul.f32 %v70, 0.5
    %v87 = vadd.f32 %v71, 0.5
    %v88 = vadd.f32 %v72, 0.5
    %v89 = vadd.f32 %v73, 0.5
    %v90 = vadd.f32 %v74, 0.5
    %v91 = vadd.f32 %v75, 0.5
    %v92 = vadd.f32 %v76, 0.5
    %v93 = vadd.f32 %v77, 0.5
    %v94 = vadd.f32 %v78, 0.5
    %v95 = vadd.f32 %v79, 0.5
    %v96 = vadd.f32 %v80, 0.5
    %v97 = vadd.f32 %v81, 0.5
    %v98 = vadd.f32 %v82, 0.5
    %v99 = vadd.f32 %v83, 0.5
    %v100 = vadd.f32 %v84, 0.5
    %v101 = vadd.f32 %v85, 0.5
    %v102 = vadd.f32 %v86, 0.5
    %v103 = vmul.f32 %v23, %v87
    %v104 = vmul.f32 %v24, %v88
    %v105 = vmul.f32 %v25, %v89
    %v106 = vmul.f32 %v26, %v90
    %v107 = vmul.f32 %v27, %v91
    %v108 = vmul.f32 %v28, %v92
    %v109 = vmul.f32 %v29, %v93
    %v110 = vmul.f32 %v30, %v94
    %v111 = vmul.f32 %v31, %v95
    %v112 = vmul.f32 %v32, %v96
    %v113 = vmul.f32 %v33, %v97
    %v114 = vmul.f32 %v34, %v98
    %v115 = vmul.f32 %v35, %v99
    %v116 = vmul.f32 %v36, %v100
    %v117 = vmul.f32 %v37, %v101
    %v118 = vmul.f32 %v38, %v102
    %119 = vst [vmem:[#allocation5] sm:$0xff] %v103
    %120 = vst [vmem:[#allocation5 + $0x8] sm:$0xff] %v104
    %121 = vst [vmem:[#allocation5 + $0x10] sm:$0xff] %v105
    %122 = vst [vmem:[#allocation5 + $0x18] sm:$0xff] %v106
    %123 = vst [vmem:[#allocation5 + $0x20] sm:$0xff] %v107
    %124 = vst [vmem:[#allocation5 + $0x28] sm:$0xff] %v108
    %125 = vst [vmem:[#allocation5 + $0x30] sm:$0xff] %v109
    %126 = vst [vmem:[#allocation5 + $0x38] sm:$0xff] %v110
    %127 = vst [vmem:[#allocation5 + $0x40] sm:$0xff] %v111
    %128 = vst [vmem:[#allocation5 + $0x48] sm:$0xff] %v112
    %129 = vst [vmem:[#allocation5 + $0x50] sm:$0xff] %v113
    %130 = vst [vmem:[#allocation5 + $0x58] sm:$0xff] %v114
    %131 = vst [vmem:[#allocation5 + $0x60] sm:$0xff] %v115
    %132 = vst [vmem:[#allocation5 + $0x68] sm:$0xff] %v116
    %133 = vst [vmem:[#allocation5 + $0x70] sm:$0xff] %v117
    %134 = vst [vmem:[#allocation5 + $0x78] sm:$0xff] %v118
    // Predicated region
    $region10: #{tpu_custom_call.1} parent=1 // pred_check
      _
    $region11: #{tpu_custom_call.1} parent=1 // pred_check_branch
      %136 = sbr.rel (0) target = $region13
    $region12: #{tpu_custom_call.1} parent=1 // pred_region
      %s138 = ssub.s32 2048, 2048
      %139 = vsyncadd [#allocation4], %s138
      %s140 = sshll.u32 [#allocation5], 4
      %s141 = int_to_ptr.vmem [resolvable:$true] %s140
      %146 = dma.vmem_to_hbm [thread:$0]  %s141, 2048, %s1, [#allocation4], 128, 128, 8
    $region13: #{tpu_custom_call.1} parent=1 // pred_fallthru
      _
    // Predicated region
    $region14: #{tpu_custom_call.1} parent=1 // pred_check
      _
    $region15: #{tpu_custom_call.1} parent=1 // pred_check_branch
      %148 = sbr.rel (0) target = $region17
    $region16: #{tpu_custom_call.1} parent=1 // pred_region
      %149 = dma.done [#allocation4], 2048
    $region17: #{tpu_custom_call.1} parent=1 // pred_fallthru
      _
    %150 = vsyncpa [#allocation3], 1
    %151 = vsyncpa [#allocation4], 1

</llo_original>
